<compile_context>
chip_gen: v7x
topology: tpu7x:2x2x1
jax: 0.10.0
libtpu: 0.0.40
codegen_flags: <defaults>
</compile_context>

<pallas_src>
import functools
import math

import jax
import jax.numpy as jnp
from jax import lax
from jax.experimental import pallas as pl
from jax.experimental.pallas import tpu as pltpu


def _round_up(v, m):
    return (v + m - 1) // m * m


def _rbf_tile_kernel(_ii_ref, _jj_ref, a_ref, b_ref, sqa_ref, sqb_ref, o_ref,
                     *, tm, tn, exp_bf16):
    """One (tm, tn) tile: o = sum-reduced-to-(8,128) of exp(min(e, 0)).

    e = sqa'_p + sqb'_q + a'_p . b'_q  where the 2/bw and -1/bw scales were
    folded into the operands / norms by the wrapper, and padded rows/cols
    carry poisoned (-1e30) norms so their exp() is exactly 0.
    """
    a = a_ref[...]                       # (tm, dp) f32 or bf16 (pre-scaled)
    b = b_ref[...]                       # (tn, dp)
    sqa = sqa_ref[...]                   # (tm, 1) f32: -||a||^2/bw (poisoned pad)
    sqb = sqb_ref[...]                   # (1, tn) f32: -||b||^2/bw (poisoned pad)

    # Gram block: contract the last dim of both operands -> MXU native, no
    # transpose; accumulate in f32.
    g = lax.dot_general(
        a, b,
        dimension_numbers=(((1,), (1,)), ((), ())),
        preferred_element_type=jnp.float32)              # (tm, tn) f32

    # Stream exponent -> exp -> add over (8,128) sub-blocks so the full exp
    # tile never lives in vregs at once.  Two interleaved accumulators break
    # the serial add chain behind the EUP.
    acc0 = jnp.zeros((8, 128), jnp.float32)
    acc1 = jnp.zeros((8, 128), jnp.float32)
    flip = False
    for r in range(tm // 8):
        rs = slice(r * 8, (r + 1) * 8)
        sqa_r = sqa[rs, :]
        for c in range(tn // 128):
            cs = slice(c * 128, (c + 1) * 128)
            e = jnp.minimum(sqa_r + (sqb[:, cs] + g[rs, cs]), 0.0)
            if exp_bf16:
                k = jnp.exp(e.astype(jnp.bfloat16)).astype(jnp.float32)
            else:
                k = jnp.exp(e)
            if flip:
                acc1 = acc1 + k
            else:
                acc0 = acc0 + k
            flip = not flip
    o_ref[...] = acc0 + acc1


def _pairwise_rbf_sum(a, b, bandwidth, symmetric, *, tm_req, tn_req,
                      use_bf16_matmul, use_bf16_exp):
    """sum_{p<Na, q<Nb} exp(-||a_p - b_q||^2 / bandwidth), tiled on TPU."""
    na, d = a.shape
    nb, db = b.shape
    assert d == db and na >= 1 and nb >= 1 and d >= 1

    lane = 128
    matmul_dtype = jnp.bfloat16 if use_bf16_matmul else jnp.float32
    row_align = 16 if use_bf16_matmul else 8

    if symmetric:
        # Row and column tiles index the same array: keep them equal.
        t = max(lane, min(_round_up(max(tm_req, tn_req) // 2 * 2, lane),
                          _round_up(na, lane)))
        tm = tn = t
    else:
        tm = max(row_align,
                 min(_round_up(tm_req, row_align), _round_up(na, row_align)))
        tn = max(lane, min(_round_up(tn_req, lane), _round_up(nb, lane)))

    na_p = _round_up(na, tm)
    nb_p = na_p if symmetric else _round_up(nb, tn)

    # Single-tile XY problems leave one v7x TensorCore idle: split the rows.
    if (not symmetric) and na_p // tm == 1 and nb_p // tn == 1 \
            and na > 2 * row_align:
        tm = _round_up((na + 1) // 2, row_align)
        na_p = _round_up(na, tm)

    dp = _round_up(d, lane)                       # lane-dense feature dim
    neg_inv_bw = -1.0 / float(bandwidth)
    # NOTE: bandwidths are module hyperparameters (Python floats); only the
    # wrapper uses them, the kernel body is bandwidth-agnostic.
    scale = math.sqrt(2.0 / float(bandwidth))
    poison = -1e30                                # exp(poison + finite) == 0

    def prep(arr, n, n_pad):
        arr32 = arr.astype(jnp.float32)
        sq = neg_inv_bw * jnp.sum(arr32 * arr32, axis=1, keepdims=True)
        sq_pad = jnp.full((n_pad, 1), poison, jnp.float32).at[:n, :].set(sq)
        scaled = (arr32 * scale).astype(matmul_dtype)
        if (n_pad, dp) == (n, d):
            data = scaled                         # no materialized pad copy
        else:
            data = jnp.zeros((n_pad, dp), matmul_dtype).at[:n, :d].set(scaled)
        return data, sq_pad

    a_in, sqa = prep(a, na, na_p)
    if symmetric:
        b_in, sqb = a_in, jnp.transpose(sqa)      # (1, na_p)
    else:
        b_in, sqb_col = prep(b, nb, nb_p)
        sqb = jnp.transpose(sqb_col)              # (1, nb_p)

    num_i = na_p // tm
    num_j = num_i if symmetric else nb_p // tn

    # Tile-step tables (scalar prefetch): only upper-triangular tiles for the
    # symmetric passes; off-diagonal tiles are weighted x2 outside the kernel.
    if symmetric:
        pairs = [(i, j) for i in range(num_i) for j in range(i, num_i)]
        w = [1.0 if i == j else 2.0 for (i, j) in pairs]
    else:
        pairs = [(i, j) for i in range(num_i) for j in range(num_j)]
        w = [1.0] * len(pairs)
    num_steps = len(pairs)
    ii_tbl = jnp.asarray([p[0] for p in pairs], jnp.int32)
    jj_tbl = jnp.asarray([p[1] for p in pairs], jnp.int32)
    weights = jnp.asarray(w, jnp.float32)

    # VMEM budget from the actual footprint (double-buffered tiles + Gram +
    # output), capped for v7x's 64 MiB VMEM.
    itemsize = jnp.dtype(matmul_dtype).itemsize
    footprint = (2 * (tm + tn) * dp * itemsize    # a/b tiles, double-buffered
                 + 4 * (tm + tn) * 4              # sqa/sqb blocks
                 + tm * tn * 4                    # Gram / exp temporaries
                 + 2 * 8 * 128 * 4)               # output block
    vmem_limit = int(min(max(2 * footprint, 16 << 20), 40 << 20))
    vmem_limit = max(vmem_limit, footprint + (4 << 20))

    kernel = functools.partial(_rbf_tile_kernel, tm=tm, tn=tn,
                               exp_bf16=use_bf16_exp)

    partials = pl.pallas_call(
        kernel,
        out_shape=jax.ShapeDtypeStruct((num_steps * 8, 128), jnp.float32),
        grid_spec=pltpu.PrefetchScalarGridSpec(
            num_scalar_prefetch=2,
            grid=(num_steps,),
            in_specs=[
                pl.BlockSpec((tm, dp), lambda t, ii, jj: (ii[t], 0)),  # a rows
                pl.BlockSpec((tn, dp), lambda t, ii, jj: (jj[t], 0)),  # b rows
                pl.BlockSpec((tm, 1), lambda t, ii, jj: (ii[t], 0)),   # -|a|^2/bw
                pl.BlockSpec((1, tn), lambda t, ii, jj: (0, jj[t])),   # -|b|^2/bw
            ],
            out_specs=pl.BlockSpec((8, 128), lambda t, ii, jj: (t, 0)),
        ),
        compiler_params=pltpu.CompilerParams(
            dimension_semantics=("parallel",),
            vmem_limit_bytes=vmem_limit,
        ),
    )(ii_tbl, jj_tbl, a_in, b_in, sqa, sqb)

    # Tiny final reduction (num_steps * 1024 f32) done outside the kernel.
    per_step = jnp.sum(partials.reshape(num_steps, 8 * 128), axis=1)
    return jnp.dot(per_step, weights)


def mod_mmd(x, y, axx=0.5, bxx=1.0, axy=1.0, bxy=1.0, ayy=0.5, byy=1.0, *,
            block_m=256, block_n=512, use_bf16_matmul=True,
            use_bf16_exp=False):
    """Pallas implementation of ModMMD.forward; x: (N, D), y: (M, D)."""
    n = x.shape[0]
    m = y.shape[0]
    xx_scale = 1.0 / (n * (n - 1)) if n != 1 else 1.0
    yy_scale = 1.0 / (m * (m - 1)) if m != 1 else 1.0
    xy_scale = -2.0 / (n * m)

    common = dict(tm_req=block_m, tn_req=block_n,
                  use_bf16_matmul=use_bf16_matmul, use_bf16_exp=use_bf16_exp)

    s_xx = _pairwise_rbf_sum(x, x, bxx, True, **common)
    s_yy = _pairwise_rbf_sum(y, y, byy, True, **common)
    # XY: the RBF sum is symmetric under swapping operands; map the larger of
    # N/M to the (finer-grained) row axis.
    if m > n:
        s_xy = _pairwise_rbf_sum(y, x, bxy, False, **common)
    else:
        s_xy = _pairwise_rbf_sum(x, y, bxy, False, **common)

    # Amplitudes and estimator scales applied on scalars (hoisted out of the
    # per-pair reduction).
    return (xx_scale * axx * s_xx
            + xy_scale * axy * s_xy
            + yy_scale * ayy * s_yy)


def _mod_mmd_ref(x, y, axx=0.5, bxx=1.0, axy=1.0, bxy=1.0, ayy=0.5, byy=1.0):
    """Pure-JAX reference matching the PyTorch module."""
    def rbf(a, b, ka, kb):
        d2 = jnp.sum((a[:, None, :] - b[None, :, :]) ** 2, axis=-1)
        return ka * jnp.exp(-d2 / kb)

    n, m = x.shape[0], y.shape[0]
    xx_scale = 1.0 / (n * (n - 1)) if n != 1 else 1.0
    yy_scale = 1.0 / (m * (m - 1)) if m != 1 else 1.0
    xy_scale = -2.0 / (n * m)
    return (xx_scale * rbf(x, x, axx, bxx).sum()
            + xy_scale * rbf(x, y, axy, bxy).sum()
            + yy_scale * rbf(y, y, ayy, byy).sum())


if __name__ == "__main__":
    key = jax.random.PRNGKey(0)
    k1, k2, k3, k4 = jax.random.split(key, 4)

    # Jit the whole loss so XLA overlaps the XX / XY / YY calls.
    mmd_default = jax.jit(lambda a, b: mod_mmd(a, b))                      # bf16 MXU
    mmd_f32 = jax.jit(lambda a, b: mod_mmd(a, b, use_bf16_matmul=False))   # full f32
    mmd_bf16exp = jax.jit(lambda a, b: mod_mmd(a, b, use_bf16_exp=True))   # bf16 EUP

    # Small case (module's "batch_size x dim" usage).
    N, M, D = 8, 8, 32
    x = jax.random.normal(k1, (N, D), dtype=jnp.float32)
    y = 0.5 * jax.random.normal(k2, (M, D), dtype=jnp.float32) + 0.3
    ref = _mod_mmd_ref(x, y)

    out_f32 = jax.block_until_ready(mmd_f32(x, y))
    assert jnp.allclose(out_f32, ref, rtol=1e-3, atol=1e-6), (out_f32, ref)

    out_def = jax.block_until_ready(mmd_default(x, y))      # bf16 Gram fast path
    assert jnp.allclose(out_def, ref, rtol=1e-1, atol=2e-3), (out_def, ref)

    out_be = jax.block_until_ready(mmd_bf16exp(x, y))        # bf16 exp (v6e/v7x)
    assert jnp.allclose(out_be, ref, rtol=1e-1, atol=2e-3), (out_be, ref)

    # Larger multi-tile case: exercises the triangular tile tables, the
    # poisoned-norm padding masks and the XY pass across several tiles.
    N2, M2, D2 = 300, 200, 48
    x2 = jax.random.normal(k3, (N2, D2), dtype=jnp.float32)
    y2 = 0.7 * jax.random.normal(k4, (M2, D2), dtype=jnp.float32) + 0.1
    ref2 = _mod_mmd_ref(x2, y2)
    out2 = jax.block_until_ready(mmd_f32(x2, y2))
    assert jnp.allclose(out2, ref2, rtol=1e-3, atol=1e-6), (out2, ref2)

    print("KERNEL_OK")
</pallas_src>

<mosaic_0001>
module attributes {stable_mosaic.version = 11 : i64} {
  func.func @_rbf_tile_kernel(%arg0: i32, %arg1: memref<1xi32, #tpu.memory_space<smem>>, %arg2: memref<1xi32, #tpu.memory_space<smem>>, %arg3: memref<128x128xf32, #tpu.memory_space<vmem>>, %arg4: memref<128x128xf32, #tpu.memory_space<vmem>>, %arg5: memref<128x1xf32, #tpu.memory_space<vmem>>, %arg6: memref<1x128xf32, #tpu.memory_space<vmem>>, %arg7: memref<8x128xf32, #tpu.memory_space<vmem>>) attributes {dimension_semantics = [#tpu.dimension_semantics<parallel>], iteration_bounds = array<i64: 1>, scalar_prefetch = 2 : i64, scratch_operands = 0 : i64, tpu.core_type = #tpu.core_type<tc>, window_params = [{transform_indices = @transform_0, window_bounds = array<i64: 128, 128>}, {transform_indices = @transform_1, window_bounds = array<i64: 128, 128>}, {transform_indices = @transform_2, window_bounds = array<i64: 128, 1>}, {transform_indices = @transform_3, window_bounds = array<i64: 1, 128>}, {transform_indices = @transform_4, window_bounds = array<i64: 8, 128>}]} {
    %c0 = arith.constant 0 : index
    %c0_0 = arith.constant 0 : index
    %0 = vector.load %arg3[%c0, %c0_0] : memref<128x128xf32, #tpu.memory_space<vmem>>, vector<128x128xf32>
    %c0_1 = arith.constant 0 : index
    %c0_2 = arith.constant 0 : index
    %1 = vector.load %arg4[%c0_1, %c0_2] : memref<128x128xf32, #tpu.memory_space<vmem>>, vector<128x128xf32>
    %c0_3 = arith.constant 0 : index
    %c0_4 = arith.constant 0 : index
    %2 = vector.load %arg5[%c0_3, %c0_4] : memref<128x1xf32, #tpu.memory_space<vmem>>, vector<128x1xf32>
    %c0_5 = arith.constant 0 : index
    %c0_6 = arith.constant 0 : index
    %3 = vector.load %arg6[%c0_5, %c0_6] : memref<1x128xf32, #tpu.memory_space<vmem>>, vector<1x128xf32>
    %cst = arith.constant dense<0.000000e+00> : vector<128x128xf32>
    %4 = tpu.matmul %0, %1, %cst {dimension_numbers = #tpu.dot_dimension_numbers<[1], [1], [0], [0], [0, 0, 1, 0], [], []>} : vector<128x128xf32>, vector<128x128xf32>, vector<128x128xf32> -> vector<128x128xf32>
    %cst_7 = arith.constant 0.000000e+00 : f32
    %5 = vector.broadcast %cst_7 : f32 to vector<8x128xf32>
    %cst_8 = arith.constant 0.000000e+00 : f32
    %6 = vector.broadcast %cst_8 : f32 to vector<8x128xf32>
    %7 = vector.extract_strided_slice %2 {offsets = [0, 0], sizes = [8, 1], strides = [1, 1]} : vector<128x1xf32> to vector<8x1xf32>
    %8 = vector.extract_strided_slice %4 {offsets = [0, 0], sizes = [8, 128], strides = [1, 1]} : vector<128x128xf32> to vector<8x128xf32>
    %9 = vector.broadcast %3 : vector<1x128xf32> to vector<8x128xf32>
    %10 = arith.addf %9, %8 : vector<8x128xf32>
    %11 = vector.broadcast %7 : vector<8x1xf32> to vector<8x128xf32>
    %12 = arith.addf %11, %10 : vector<8x128xf32>
    %cst_9 = arith.constant 0.000000e+00 : f32
    %13 = vector.broadcast %cst_9 : f32 to vector<8x128xf32>
    %14 = arith.minimumf %12, %13 : vector<8x128xf32>
    %15 = math.exp %14 : vector<8x128xf32>
    %16 = arith.addf %5, %15 : vector<8x128xf32>
    %17 = vector.extract_strided_slice %2 {offsets = [8, 0], sizes = [8, 1], strides = [1, 1]} : vector<128x1xf32> to vector<8x1xf32>
    %18 = vector.extract_strided_slice %4 {offsets = [8, 0], sizes = [8, 128], strides = [1, 1]} : vector<128x128xf32> to vector<8x128xf32>
    %19 = vector.broadcast %3 : vector<1x128xf32> to vector<8x128xf32>
    %20 = arith.addf %19, %18 : vector<8x128xf32>
    %21 = vector.broadcast %17 : vector<8x1xf32> to vector<8x128xf32>
    %22 = arith.addf %21, %20 : vector<8x128xf32>
    %cst_10 = arith.constant 0.000000e+00 : f32
    %23 = vector.broadcast %cst_10 : f32 to vector<8x128xf32>
    %24 = arith.minimumf %22, %23 : vector<8x128xf32>
    %25 = math.exp %24 : vector<8x128xf32>
    %26 = arith.addf %6, %25 : vector<8x128xf32>
    %27 = vector.extract_strided_slice %2 {offsets = [16, 0], sizes = [8, 1], strides = [1, 1]} : vector<128x1xf32> to vector<8x1xf32>
    %28 = vector.extract_strided_slice %4 {offsets = [16, 0], sizes = [8, 128], strides = [1, 1]} : vector<128x128xf32> to vector<8x128xf32>
    %29 = vector.broadcast %3 : vector<1x128xf32> to vector<8x128xf32>
    %30 = arith.addf %29, %28 : vector<8x128xf32>
    %31 = vector.broadcast %27 : vector<8x1xf32> to vector<8x128xf32>
    %32 = arith.addf %31, %30 : vector<8x128xf32>
    %cst_11 = arith.constant 0.000000e+00 : f32
    %33 = vector.broadcast %cst_11 : f32 to vector<8x128xf32>
    %34 = arith.minimumf %32, %33 : vector<8x128xf32>
    %35 = math.exp %34 : vector<8x128xf32>
    %36 = arith.addf %16, %35 : vector<8x128xf32>
    %37 = vector.extract_strided_slice %2 {offsets = [24, 0], sizes = [8, 1], strides = [1, 1]} : vector<128x1xf32> to vector<8x1xf32>
    %38 = vector.extract_strided_slice %4 {offsets = [24, 0], sizes = [8, 128], strides = [1, 1]} : vector<128x128xf32> to vector<8x128xf32>
    %39 = vector.broadcast %3 : vector<1x128xf32> to vector<8x128xf32>
    %40 = arith.addf %39, %38 : vector<8x128xf32>
    %41 = vector.broadcast %37 : vector<8x1xf32> to vector<8x128xf32>
    %42 = arith.addf %41, %40 : vector<8x128xf32>
    %cst_12 = arith.constant 0.000000e+00 : f32
    %43 = vector.broadcast %cst_12 : f32 to vector<8x128xf32>
    %44 = arith.minimumf %42, %43 : vector<8x128xf32>
    %45 = math.exp %44 : vector<8x128xf32>
    %46 = arith.addf %26, %45 : vector<8x128xf32>
    %47 = vector.extract_strided_slice %2 {offsets = [32, 0], sizes = [8, 1], strides = [1, 1]} : vector<128x1xf32> to vector<8x1xf32>
    %48 = vector.extract_strided_slice %4 {offsets = [32, 0], sizes = [8, 128], strides = [1, 1]} : vector<128x128xf32> to vector<8x128xf32>
    %49 = vector.broadcast %3 : vector<1x128xf32> to vector<8x128xf32>
    %50 = arith.addf %49, %48 : vector<8x128xf32>
    %51 = vector.broadcast %47 : vector<8x1xf32> to vector<8x128xf32>
    %52 = arith.addf %51, %50 : vector<8x128xf32>
    %cst_13 = arith.constant 0.000000e+00 : f32
    %53 = vector.broadcast %cst_13 : f32 to vector<8x128xf32>
    %54 = arith.minimumf %52, %53 : vector<8x128xf32>
    %55 = math.exp %54 : vector<8x128xf32>
    %56 = arith.addf %36, %55 : vector<8x128xf32>
    %57 = vector.extract_strided_slice %2 {offsets = [40, 0], sizes = [8, 1], strides = [1, 1]} : vector<128x1xf32> to vector<8x1xf32>
    %58 = vector.extract_strided_slice %4 {offsets = [40, 0], sizes = [8, 128], strides = [1, 1]} : vector<128x128xf32> to vector<8x128xf32>
    %59 = vector.broadcast %3 : vector<1x128xf32> to vector<8x128xf32>
    %60 = arith.addf %59, %58 : vector<8x128xf32>
    %61 = vector.broadcast %57 : vector<8x1xf32> to vector<8x128xf32>
    %62 = arith.addf %61, %60 : vector<8x128xf32>
    %cst_14 = arith.constant 0.000000e+00 : f32
    %63 = vector.broadcast %cst_14 : f32 to vector<8x128xf32>
    %64 = arith.minimumf %62, %63 : vector<8x128xf32>
    %65 = math.exp %64 : vector<8x128xf32>
    %66 = arith.addf %46, %65 : vector<8x128xf32>
    %67 = vector.extract_strided_slice %2 {offsets = [48, 0], sizes = [8, 1], strides = [1, 1]} : vector<128x1xf32> to vector<8x1xf32>
    %68 = vector.extract_strided_slice %4 {offsets = [48, 0], sizes = [8, 128], strides = [1, 1]} : vector<128x128xf32> to vector<8x128xf32>
    %69 = vector.broadcast %3 : vector<1x128xf32> to vector<8x128xf32>
    %70 = arith.addf %69, %68 : vector<8x128xf32>
    %71 = vector.broadcast %67 : vector<8x1xf32> to vector<8x128xf32>
    %72 = arith.addf %71, %70 : vector<8x128xf32>
    %cst_15 = arith.constant 0.000000e+00 : f32
    %73 = vector.broadcast %cst_15 : f32 to vector<8x128xf32>
    %74 = arith.minimumf %72, %73 : vector<8x128xf32>
    %75 = math.exp %74 : vector<8x128xf32>
    %76 = arith.addf %56, %75 : vector<8x128xf32>
    %77 = vector.extract_strided_slice %2 {offsets = [56, 0], sizes = [8, 1], strides = [1, 1]} : vector<128x1xf32> to vector<8x1xf32>
    %78 = vector.extract_strided_slice %4 {offsets = [56, 0], sizes = [8, 128], strides = [1, 1]} : vector<128x128xf32> to vector<8x128xf32>
    %79 = vector.broadcast %3 : vector<1x128xf32> to vector<8x128xf32>
    %80 = arith.addf %79, %78 : vector<8x128xf32>
    %81 = vector.broadcast %77 : vector<8x1xf32> to vector<8x128xf32>
    %82 = arith.addf %81, %80 : vector<8x128xf32>
    %cst_16 = arith.constant 0.000000e+00 : f32
    %83 = vector.broadcast %cst_16 : f32 to vector<8x128xf32>
    %84 = arith.minimumf %82, %83 : vector<8x128xf32>
    %85 = math.exp %84 : vector<8x128xf32>
    %86 = arith.addf %66, %85 : vector<8x128xf32>
    %87 = vector.extract_strided_slice %2 {offsets = [64, 0], sizes = [8, 1], strides = [1, 1]} : vector<128x1xf32> to vector<8x1xf32>
    %88 = vector.extract_strided_slice %4 {offsets = [64, 0], sizes = [8, 128], strides = [1, 1]} : vector<128x128xf32> to vector<8x128xf32>
    %89 = vector.broadcast %3 : vector<1x128xf32> to vector<8x128xf32>
    %90 = arith.addf %89, %88 : vector<8x128xf32>
    %91 = vector.broadcast %87 : vector<8x1xf32> to vector<8x128xf32>
    %92 = arith.addf %91, %90 : vector<8x128xf32>
    %cst_17 = arith.constant 0.000000e+00 : f32
    %93 = vector.broadcast %cst_17 : f32 to vector<8x128xf32>
    %94 = arith.minimumf %92, %93 : vector<8x128xf32>
    %95 = math.exp %94 : vector<8x128xf32>
    %96 = arith.addf %76, %95 : vector<8x128xf32>
    %97 = vector.extract_strided_slice %2 {offsets = [72, 0], sizes = [8, 1], strides = [1, 1]} : vector<128x1xf32> to vector<8x1xf32>
    %98 = vector.extract_strided_slice %4 {offsets = [72, 0], sizes = [8, 128], strides = [1, 1]} : vector<128x128xf32> to vector<8x128xf32>
    %99 = vector.broadcast %3 : vector<1x128xf32> to vector<8x128xf32>
    %100 = arith.addf %99, %98 : vector<8x128xf32>
    %101 = vector.broadcast %97 : vector<8x1xf32> to vector<8x128xf32>
    %102 = arith.addf %101, %100 : vector<8x128xf32>
    %cst_18 = arith.constant 0.000000e+00 : f32
    %103 = vector.broadcast %cst_18 : f32 to vector<8x128xf32>
    %104 = arith.minimumf %102, %103 : vector<8x128xf32>
    %105 = math.exp %104 : vector<8x128xf32>
    %106 = arith.addf %86, %105 : vector<8x128xf32>
    %107 = vector.extract_strided_slice %2 {offsets = [80, 0], sizes = [8, 1], strides = [1, 1]} : vector<128x1xf32> to vector<8x1xf32>
    %108 = vector.extract_strided_slice %4 {offsets = [80, 0], sizes = [8, 128], strides = [1, 1]} : vector<128x128xf32> to vector<8x128xf32>
    %109 = vector.broadcast %3 : vector<1x128xf32> to vector<8x128xf32>
    %110 = arith.addf %109, %108 : vector<8x128xf32>
    %111 = vector.broadcast %107 : vector<8x1xf32> to vector<8x128xf32>
    %112 = arith.addf %111, %110 : vector<8x128xf32>
    %cst_19 = arith.constant 0.000000e+00 : f32
    %113 = vector.broadcast %cst_19 : f32 to vector<8x128xf32>
    %114 = arith.minimumf %112, %113 : vector<8x128xf32>
    %115 = math.exp %114 : vector<8x128xf32>
    %116 = arith.addf %96, %115 : vector<8x128xf32>
    %117 = vector.extract_strided_slice %2 {offsets = [88, 0], sizes = [8, 1], strides = [1, 1]} : vector<128x1xf32> to vector<8x1xf32>
    %118 = vector.extract_strided_slice %4 {offsets = [88, 0], sizes = [8, 128], strides = [1, 1]} : vector<128x128xf32> to vector<8x128xf32>
    %119 = vector.broadcast %3 : vector<1x128xf32> to vector<8x128xf32>
    %120 = arith.addf %119, %118 : vector<8x128xf32>
    %121 = vector.broadcast %117 : vector<8x1xf32> to vector<8x128xf32>
    %122 = arith.addf %121, %120 : vector<8x128xf32>
    %cst_20 = arith.constant 0.000000e+00 : f32
    %123 = vector.broadcast %cst_20 : f32 to vector<8x128xf32>
    %124 = arith.minimumf %122, %123 : vector<8x128xf32>
    %125 = math.exp %124 : vector<8x128xf32>
    %126 = arith.addf %106, %125 : vector<8x128xf32>
    %127 = vector.extract_strided_slice %2 {offsets = [96, 0], sizes = [8, 1], strides = [1, 1]} : vector<128x1xf32> to vector<8x1xf32>
    %128 = vector.extract_strided_slice %4 {offsets = [96, 0], sizes = [8, 128], strides = [1, 1]} : vector<128x128xf32> to vector<8x128xf32>
    %129 = vector.broadcast %3 : vector<1x128xf32> to vector<8x128xf32>
    %130 = arith.addf %129, %128 : vector<8x128xf32>
    %131 = vector.broadcast %127 : vector<8x1xf32> to vector<8x128xf32>
    %132 = arith.addf %131, %130 : vector<8x128xf32>
    %cst_21 = arith.constant 0.000000e+00 : f32
    %133 = vector.broadcast %cst_21 : f32 to vector<8x128xf32>
    %134 = arith.minimumf %132, %133 : vector<8x128xf32>
    %135 = math.exp %134 : vector<8x128xf32>
    %136 = arith.addf %116, %135 : vector<8x128xf32>
    %137 = vector.extract_strided_slice %2 {offsets = [104, 0], sizes = [8, 1], strides = [1, 1]} : vector<128x1xf32> to vector<8x1xf32>
    %138 = vector.extract_strided_slice %4 {offsets = [104, 0], sizes = [8, 128], strides = [1, 1]} : vector<128x128xf32> to vector<8x128xf32>
    %139 = vector.broadcast %3 : vector<1x128xf32> to vector<8x128xf32>
    %140 = arith.addf %139, %138 : vector<8x128xf32>
    %141 = vector.broadcast %137 : vector<8x1xf32> to vector<8x128xf32>
    %142 = arith.addf %141, %140 : vector<8x128xf32>
    %cst_22 = arith.constant 0.000000e+00 : f32
    %143 = vector.broadcast %cst_22 : f32 to vector<8x128xf32>
    %144 = arith.minimumf %142, %143 : vector<8x128xf32>
    %145 = math.exp %144 : vector<8x128xf32>
    %146 = arith.addf %126, %145 : vector<8x128xf32>
    %147 = vector.extract_strided_slice %2 {offsets = [112, 0], sizes = [8, 1], strides = [1, 1]} : vector<128x1xf32> to vector<8x1xf32>
    %148 = vector.extract_strided_slice %4 {offsets = [112, 0], sizes = [8, 128], strides = [1, 1]} : vector<128x128xf32> to vector<8x128xf32>
    %149 = vector.broadcast %3 : vector<1x128xf32> to vector<8x128xf32>
    %150 = arith.addf %149, %148 : vector<8x128xf32>
    %151 = vector.broadcast %147 : vector<8x1xf32> to vector<8x128xf32>
    %152 = arith.addf %151, %150 : vector<8x128xf32>
    %cst_23 = arith.constant 0.000000e+00 : f32
    %153 = vector.broadcast %cst_23 : f32 to vector<8x128xf32>
    %154 = arith.minimumf %152, %153 : vector<8x128xf32>
    %155 = math.exp %154 : vector<8x128xf32>
    %156 = arith.addf %136, %155 : vector<8x128xf32>
    %157 = vector.extract_strided_slice %2 {offsets = [120, 0], sizes = [8, 1], strides = [1, 1]} : vector<128x1xf32> to vector<8x1xf32>
    %158 = vector.extract_strided_slice %4 {offsets = [120, 0], sizes = [8, 128], strides = [1, 1]} : vector<128x128xf32> to vector<8x128xf32>
    %159 = vector.broadcast %3 : vector<1x128xf32> to vector<8x128xf32>
    %160 = arith.addf %159, %158 : vector<8x128xf32>
    %161 = vector.broadcast %157 : vector<8x1xf32> to vector<8x128xf32>
    %162 = arith.addf %161, %160 : vector<8x128xf32>
    %cst_24 = arith.constant 0.000000e+00 : f32
    %163 = vector.broadcast %cst_24 : f32 to vector<8x128xf32>
    %164 = arith.minimumf %162, %163 : vector<8x128xf32>
    %165 = math.exp %164 : vector<8x128xf32>
    %166 = arith.addf %146, %165 : vector<8x128xf32>
    %167 = arith.addf %156, %166 : vector<8x128xf32>
    %c0_25 = arith.constant 0 : index
    %c0_26 = arith.constant 0 : index
    %168 = vector.load %arg7[%c0_25, %c0_26] : memref<8x128xf32, #tpu.memory_space<vmem>>, vector<8x128xf32>
    tpu.vector_store %arg7[%c0_25, %c0_26], %167 {strides = array<i32>} : memref<8x128xf32, #tpu.memory_space<vmem>>, vector<8x128xf32>,
    return
  }
  func.func @transform_0(%arg0: i32, %arg1: memref<1xi32, #tpu.memory_space<smem>>, %arg2: memref<1xi32, #tpu.memory_space<smem>>) -> (i32, i32) {
    %0 = arith.index_cast %arg0 : i32 to index
    %1 = memref.load %arg1[%0] : memref<1xi32, #tpu.memory_space<smem>>
    %c0_i32 = arith.constant 0 : i32
    %c0_i32_0 = arith.constant 0 : i32
    return %1, %c0_i32 : i32, i32
  }
  func.func @transform_1(%arg0: i32, %arg1: memref<1xi32, #tpu.memory_space<smem>>, %arg2: memref<1xi32, #tpu.memory_space<smem>>) -> (i32, i32) {
    %0 = arith.index_cast %arg0 : i32 to index
    %1 = memref.load %arg2[%0] : memref<1xi32, #tpu.memory_space<smem>>
    %c0_i32 = arith.constant 0 : i32
    %c0_i32_0 = arith.constant 0 : i32
    return %1, %c0_i32 : i32, i32
  }
  func.func @transform_2(%arg0: i32, %arg1: memref<1xi32, #tpu.memory_space<smem>>, %arg2: memref<1xi32, #tpu.memory_space<smem>>) -> (i32, i32) {
    %0 = arith.index_cast %arg0 : i32 to index
    %1 = memref.load %arg1[%0] : memref<1xi32, #tpu.memory_space<smem>>
    %c0_i32 = arith.constant 0 : i32
    %c0_i32_0 = arith.constant 0 : i32
    return %1, %c0_i32 : i32, i32
  }
  func.func @transform_3(%arg0: i32, %arg1: memref<1xi32, #tpu.memory_space<smem>>, %arg2: memref<1xi32, #tpu.memory_space<smem>>) -> (i32, i32) {
    %0 = arith.index_cast %arg0 : i32 to index
    %1 = memref.load %arg2[%0] : memref<1xi32, #tpu.memory_space<smem>>
    %c0_i32 = arith.constant 0 : i32
    %c0_i32_0 = arith.constant 0 : i32
    return %c0_i32, %1 : i32, i32
  }
  func.func @transform_4(%arg0: i32, %arg1: memref<1xi32, #tpu.memory_space<smem>>, %arg2: memref<1xi32, #tpu.memory_space<smem>>) -> (i32, i32) {
    %c0_i32 = arith.constant 0 : i32
    %c0_i32_0 = arith.constant 0 : i32
    return %arg0, %c0_i32 : i32, i32
  }
}

module attributes {stable_mosaic.version = 11 : i64} {
  func.func @_rbf_tile_kernel(%arg0: i32, %arg1: memref<1xi32, #tpu.memory_space<smem>>, %arg2: memref<1xi32, #tpu.memory_space<smem>>, %arg3: memref<8x128xf32, #tpu.memory_space<vmem>>, %arg4: memref<128x128xf32, #tpu.memory_space<vmem>>, %arg5: memref<8x1xf32, #tpu.memory_space<vmem>>, %arg6: memref<1x128xf32, #tpu.memory_space<vmem>>, %arg7: memref<8x128xf32, #tpu.memory_space<vmem>>) attributes {dimension_semantics = [#tpu.dimension_semantics<parallel>], iteration_bounds = array<i64: 1>, scalar_prefetch = 2 : i64, scratch_operands = 0 : i64, tpu.core_type = #tpu.core_type<tc>, window_params = [{transform_indices = @transform_0, window_bounds = array<i64: 8, 128>}, {transform_indices = @transform_1, window_bounds = array<i64: 128, 128>}, {transform_indices = @transform_2, window_bounds = array<i64: 8, 1>}, {transform_indices = @transform_3, window_bounds = array<i64: 1, 128>}, {transform_indices = @transform_4, window_bounds = array<i64: 8, 128>}]} {
    %c0 = arith.constant 0 : index
    %c0_0 = arith.constant 0 : index
    %0 = vector.load %arg3[%c0, %c0_0] : memref<8x128xf32, #tpu.memory_space<vmem>>, vector<8x128xf32>
    %c0_1 = arith.constant 0 : index
    %c0_2 = arith.constant 0 : index
    %1 = vector.load %arg4[%c0_1, %c0_2] : memref<128x128xf32, #tpu.memory_space<vmem>>, vector<128x128xf32>
    %c0_3 = arith.constant 0 : index
    %c0_4 = arith.constant 0 : index
    %2 = vector.load %arg5[%c0_3, %c0_4] : memref<8x1xf32, #tpu.memory_space<vmem>>, vector<8x1xf32>
    %c0_5 = arith.constant 0 : index
    %c0_6 = arith.constant 0 : index
    %3 = vector.load %arg6[%c0_5, %c0_6] : memref<1x128xf32, #tpu.memory_space<vmem>>, vector<1x128xf32>
    %cst = arith.constant dense<0.000000e+00> : vector<8x128xf32>
    %4 = tpu.matmul %0, %1, %cst {dimension_numbers = #tpu.dot_dimension_numbers<[1], [1], [0], [0], [0, 0, 1, 0], [], []>} : vector<8x128xf32>, vector<128x128xf32>, vector<8x128xf32> -> vector<8x128xf32>
    %cst_7 = arith.constant 0.000000e+00 : f32
    %5 = vector.broadcast %cst_7 : f32 to vector<8x128xf32>
    %cst_8 = arith.constant 0.000000e+00 : f32
    %6 = vector.broadcast %cst_8 : f32 to vector<8x128xf32>
    %7 = vector.broadcast %3 : vector<1x128xf32> to vector<8x128xf32>
    %8 = arith.addf %7, %4 : vector<8x128xf32>
    %9 = vector.broadcast %2 : vector<8x1xf32> to vector<8x128xf32>
    %10 = arith.addf %9, %8 : vector<8x128xf32>
    %cst_9 = arith.constant 0.000000e+00 : f32
    %11 = vector.broadcast %cst_9 : f32 to vector<8x128xf32>
    %12 = arith.minimumf %10, %11 : vector<8x128xf32>
    %13 = math.exp %12 : vector<8x128xf32>
    %14 = arith.addf %5, %13 : vector<8x128xf32>
    %15 = arith.addf %14, %6 : vector<8x128xf32>
    %c0_10 = arith.constant 0 : index
    %c0_11 = arith.constant 0 : index
    %16 = vector.load %arg7[%c0_10, %c0_11] : memref<8x128xf32, #tpu.memory_space<vmem>>, vector<8x128xf32>
    tpu.vector_store %arg7[%c0_10, %c0_11], %15 {strides = array<i32>} : memref<8x128xf32, #tpu.memory_space<vmem>>, vector<8x128xf32>,
    return
  }
  func.func @transform_0(%arg0: i32, %arg1: memref<1xi32, #tpu.memory_space<smem>>, %arg2: memref<1xi32, #tpu.memory_space<smem>>) -> (i32, i32) {
    %0 = arith.index_cast %arg0 : i32 to index
    %1 = memref.load %arg1[%0] : memref<1xi32, #tpu.memory_space<smem>>
    %c0_i32 = arith.constant 0 : i32
    %c0_i32_0 = arith.constant 0 : i32
    return %1, %c0_i32 : i32, i32
  }
  func.func @transform_1(%arg0: i32, %arg1: memref<1xi32, #tpu.memory_space<smem>>, %arg2: memref<1xi32, #tpu.memory_space<smem>>) -> (i32, i32) {
    %0 = arith.index_cast %arg0 : i32 to index
    %1 = memref.load %arg2[%0] : memref<1xi32, #tpu.memory_space<smem>>
    %c0_i32 = arith.constant 0 : i32
    %c0_i32_0 = arith.constant 0 : i32
    return %1, %c0_i32 : i32, i32
  }
  func.func @transform_2(%arg0: i32, %arg1: memref<1xi32, #tpu.memory_space<smem>>, %arg2: memref<1xi32, #tpu.memory_space<smem>>) -> (i32, i32) {
    %0 = arith.index_cast %arg0 : i32 to index
    %1 = memref.load %arg1[%0] : memref<1xi32, #tpu.memory_space<smem>>
    %c0_i32 = arith.constant 0 : i32
    %c0_i32_0 = arith.constant 0 : i32
    return %1, %c0_i32 : i32, i32
  }
  func.func @transform_3(%arg0: i32, %arg1: memref<1xi32, #tpu.memory_space<smem>>, %arg2: memref<1xi32, #tpu.memory_space<smem>>) -> (i32, i32) {
    %0 = arith.index_cast %arg0 : i32 to index
    %1 = memref.load %arg2[%0] : memref<1xi32, #tpu.memory_space<smem>>
    %c0_i32 = arith.constant 0 : i32
    %c0_i32_0 = arith.constant 0 : i32
    return %c0_i32, %1 : i32, i32
  }
  func.func @transform_4(%arg0: i32, %arg1: memref<1xi32, #tpu.memory_space<smem>>, %arg2: memref<1xi32, #tpu.memory_space<smem>>) -> (i32, i32) {
    %c0_i32 = arith.constant 0 : i32
    %c0_i32_0 = arith.constant 0 : i32
    return %arg0, %c0_i32 : i32, i32
  }
}

</mosaic_0001>

<llo_original>
// kernel: _lambda_.5
$region0: #{_lambda_.5}
  #allocation0 [shape = 'u32[]', space=smem, size = 0x4, offset = 0x4, fixed_abs, tag = 'smem constant byte address 0x4 - core index']
  #allocation1 [shape = 'u32[144,128]{1,0:T(1,128)}', space=vmem, size = 0x12000, scoped, tag = 'internal scratch']
  #allocation2 [shape = 's32[1]{0}', space=sflag, size = 0x4, scoped, tag = 'scoped memory for _lambda_.5']
  #allocation3 [shape = 's32[1]{0:T(128)S(6)}', space=smem, size = 0x200, scoped, tag = 'prefetched SMEM operand 0']
  #allocation4 [shape = 's32[1]{0:T(128)S(6)}', space=smem, size = 0x200, scoped, tag = 'prefetched SMEM operand 1']
  %s0 = inlined_call_operand.<no memory space> [shape: s32[1], index: 0, kind: input, shape index: {}, may-alias: {0,1}]
  %s1 = inlined_call_operand.<no memory space> [shape: s32[1], index: 1, kind: input, shape index: {}, may-alias: {0,1}]
  %s2 = inlined_call_operand.vmem [shape: f32[8,128], index: 2, kind: input, shape index: {}]
  %s3 = inlined_call_operand.vmem [shape: f32[128,128], index: 3, kind: input, shape index: {}]
  %s4 = inlined_call_operand.vmem [shape: f32[8,1], index: 4, kind: input, shape index: {}]
  %s5 = inlined_call_operand.vmem [shape: f32[1,128], index: 5, kind: input, shape index: {}]
  %s6 = inlined_call_operand.vmem [shape: f32[8,128], index: 6, kind: output, shape index: {}]
  %s7 = sld [smem:[#allocation0]]
  $region26: #{_lambda_.5} parent=0
    _
  %s9 = ssub.s32 1, %s7
  %s10 = scalar_select 0, %s9, %s7
  %11 = sst [smem:[#allocation3]] %s0
  %12 = sst [smem:[#allocation4]] %s1
  // Predicated region
  $region2: #{_lambda_.5} parent=0 // pred_check
    _
  $region3: #{_lambda_.5} parent=0 // pred_check_branch
    %14 = sbr.rel (0) target = $region5
  $region4: #{_lambda_.5} parent=0 // pred_region
    %s15 = sld [smem:[#allocation3]]
    %p16 = scmp.lt.s32.totalorder %s15, 0
    %s17 = scalar_select %p16, %s15, 0
    %s18 = smul.addr %s17, 8
    %s19 = scalar_lea.vmem %s2, %s18
    %s20 = sld [smem:[#allocation3]]
  $region5: #{_lambda_.5} parent=0 // pred_fallthru
    _
  // Predicated region
  $region6: #{_lambda_.5} parent=0 // pred_check
    _
  $region7: #{_lambda_.5} parent=0 // pred_check_branch
    %22 = sbr.rel (0) target = $region9
  $region8: #{_lambda_.5} parent=0 // pred_region
    %s23 = sld [smem:[#allocation4]]
    %s24 = smul.u32 16, %s23
    %p25 = scmp.lt.s32.totalorder %s24, 15
    %s26 = scalar_select %p25, %s24, 15
    %s27 = smul.addr %s26, 8
    %s28 = scalar_lea.vmem %s3, %s27
    %s29 = sld [smem:[#allocation4]]
    %s30 = smul.u32 16, %s29
  $region9: #{_lambda_.5} parent=0 // pred_fallthru
    _
  // Predicated region
  $region10: #{_lambda_.5} parent=0 // pred_check
    _
  $region11: #{_lambda_.5} parent=0 // pred_check_branch
    %32 = sbr.rel (0) target = $region13
  $region12: #{_lambda_.5} parent=0 // pred_region
    %s33 = sld [smem:[#allocation3]]
    %p34 = scmp.lt.s32.totalorder %s33, 0
    %s35 = scalar_select %p34, %s33, 0
    %s36 = smul.addr %s35, 8
    %s37 = scalar_lea.vmem %s4, %s36
    %s38 = sld [smem:[#allocation3]]
  $region13: #{_lambda_.5} parent=0 // pred_fallthru
    _
  // Predicated region
  $region14: #{_lambda_.5} parent=0 // pred_check
    _
  $region15: #{_lambda_.5} parent=0 // pred_check_branch
    %40 = sbr.rel (0) target = $region17
  $region16: #{_lambda_.5} parent=0 // pred_region
    %s41 = sld [smem:[#allocation4]]
    %p42 = scmp.lt.s32.totalorder %s41, 0
    %s43 = scalar_select %p42, %s41, 0
    %s44 = scalar_lea.vmem %s5, %s43
    %s45 = sld [smem:[#allocation4]]
  $region17: #{_lambda_.5} parent=0 // pred_fallthru
    _
  %s46 = sld [smem:[#allocation3]]
  %p47 = scmp.lt.s32.totalorder %s46, 0
  %s48 = scalar_select %p47, %s46, 0
  %s49 = smul.addr %s48, 8
  %s50 = scalar_lea.vmem %s2, %s49
  %s51 = sld [smem:[#allocation4]]
  %s52 = smul.u32 16, %s51
  %p53 = scmp.lt.s32.totalorder %s52, 15
  %s54 = scalar_select %p53, %s52, 15
  %s55 = smul.addr %s54, 8
  %s56 = scalar_lea.vmem %s3, %s55
  %s57 = sld [smem:[#allocation3]]
  %p58 = scmp.lt.s32.totalorder %s57, 0
  %s59 = scalar_select %p58, %s57, 0
  %s60 = smul.addr %s59, 8
  %s61 = scalar_lea.vmem %s4, %s60
  %s62 = sld [smem:[#allocation4]]
  %p63 = scmp.lt.s32.totalorder %s62, 0
  %s64 = scalar_select %p63, %s62, 0
  %s65 = scalar_lea.vmem %s5, %s64
  %s66 = sld [smem:[#allocation3]]
  %p67 = scmp.lt.s32.totalorder %s66, 0
  %s68 = scalar_select %p67, %s66, 0
  %s69 = smul.addr %s68, 8
  %s70 = scalar_lea.vmem %s2, %s69
  %s71 = sld [smem:[#allocation3]]
  %s72 = sld [smem:[#allocation4]]
  %s73 = smul.u32 16, %s72
  %p74 = scmp.lt.s32.totalorder %s73, 15
  %s75 = scalar_select %p74, %s73, 15
  %s76 = smul.addr %s75, 8
  %s77 = scalar_lea.vmem %s3, %s76
  %s78 = sld [smem:[#allocation4]]
  %s79 = smul.u32 16, %s78
  %s80 = sld [smem:[#allocation3]]
  %p81 = scmp.lt.s32.totalorder %s80, 0
  %s82 = scalar_select %p81, %s80, 0
  %s83 = smul.addr %s82, 8
  %s84 = scalar_lea.vmem %s4, %s83
  %s85 = sld [smem:[#allocation3]]
  %s86 = sld [smem:[#allocation4]]
  %p87 = scmp.lt.s32.totalorder %s86, 0
  %s88 = scalar_select %p87, %s86, 0
  %s89 = scalar_lea.vmem %s5, %s88
  %s90 = sld [smem:[#allocation4]]
  %v91 = vld [vmem:[%s70] sm:$0xff]
  %v92 = vld [vmem:[%s77] sm:$0xff]
  %v93 = vld [vmem:[%s77 + $0x8] sm:$0xff]
  %v94 = vld [vmem:[%s77 + $0x10] sm:$0xff]
  %v95 = vld [vmem:[%s77 + $0x18] sm:$0xff]
  %v96 = vld [vmem:[%s77 + $0x20] sm:$0xff]
  %v97 = vld [vmem:[%s77 + $0x28] sm:$0xff]
  %v98 = vld [vmem:[%s77 + $0x30] sm:$0xff]
  %v99 = vld [vmem:[%s77 + $0x38] sm:$0xff]
  %v100 = vld [vmem:[%s77 + $0x40] sm:$0xff]
  %v101 = vld [vmem:[%s77 + $0x48] sm:$0xff]
  %v102 = vld [vmem:[%s77 + $0x50] sm:$0xff]
  %v103 = vld [vmem:[%s77 + $0x58] sm:$0xff]
  %v104 = vld [vmem:[%s77 + $0x60] sm:$0xff]
  %v105 = vld [vmem:[%s77 + $0x68] sm:$0xff]
  %v106 = vld [vmem:[%s77 + $0x70] sm:$0xff]
  %v107 = vld [vmem:[%s77 + $0x78] sm:$0xff]
  %v108 = vld [vmem:[%s84] sm:$0xff]
  %v109 = vld [vmem:[%s89] sm:$0x1]
  %110 = vmatprep.subr.mxu0 0.0
  %111 = vmatpush1.xpose.msra.mxu0 %v92
  %112 = vmatprep.subr.mxu0 0.0
  %113 = vmatpush1.xpose.msra.mxu0 %v93
  %114 = vmatprep.subr.mxu0 0.0
  %115 = vmatpush1.xpose.msra.mxu0 %v94
  %116 = vmatprep.subr.mxu0 0.0
  %117 = vmatpush1.xpose.msra.mxu0 %v95
  %118 = vmatprep.subr.mxu0 0.0
  %119 = vmatpush1.xpose.msra.mxu0 %v96
  %120 = vmatprep.subr.mxu0 0.0
  %121 = vmatpush1.xpose.msra.mxu0 %v97
  %122 = vmatprep.subr.mxu0 0.0
  %123 = vmatpush1.xpose.msra.mxu0 %v98
  %124 = vmatprep.subr.mxu0 0.0
  %125 = vmatpush1.xpose.msra.mxu0 %v99
  %126 = vmatprep.subr.mxu0 0.0
  %127 = vmatpush1.xpose.msra.mxu0 %v100
  %128 = vmatprep.subr.mxu0 0.0
  %129 = vmatpush1.xpose.msra.mxu0 %v101
  %130 = vmatprep.subr.mxu0 0.0
  %131 = vmatpush1.xpose.msra.mxu0 %v102
  %132 = vmatprep.subr.mxu0 0.0
  %133 = vmatpush1.xpose.msra.mxu0 %v103
  %134 = vmatprep.subr.mxu0 0.0
  %135 = vmatpush1.xpose.msra.mxu0 %v104
  %136 = vmatprep.subr.mxu0 0.0
  %137 = vmatpush1.xpose.msra.mxu0 %v105
  %138 = vmatprep.subr.mxu0 0.0
  %139 = vmatpush1.xpose.msra.mxu0 %v106
  %140 = vmatprep.subr.mxu0 0.0
  %141 = vmatpush1.xpose.msra.mxu0 %v107
  %142 = vmatprep.subr.mxu0 0.0
  %143 = vmatpush1.xpose.msra.mxu0 0.0
  %144 = vmatprep.subr.mxu0 0.0
  %145 = vmatpush1.xpose.msra.mxu0 0.0
  %146 = vmatprep.subr.mxu0 0.0
  %147 = vmatpush1.xpose.msra.mxu0 0.0
  %148 = vmatprep.subr.mxu0 0.0
  %149 = vmatpush1.xpose.msra.mxu0 0.0
  %150 = vmatprep.subr.mxu0 0.0
  %151 = vmatpush1.xpose.msra.mxu0 0.0
  %152 = vmatprep.subr.mxu0 0.0
  %153 = vmatpush1.xpose.msra.mxu0 0.0
  %154 = vmatprep.subr.mxu0 0.0
  %155 = vmatpush1.xpose.msra.mxu0 0.0
  %156 = vmatprep.subr.mxu0 0.0
  %157 = vmatpush1.xpose.msra.mxu0 0.0
  %158 = vmatprep.subr.mxu0 0.0
  %159 = vmatpush1.xpose.msra.mxu0 0.0
  %160 = vmatprep.subr.mxu0 0.0
  %161 = vmatpush1.xpose.msra.mxu0 0.0
  %162 = vmatprep.subr.mxu0 0.0
  %163 = vmatpush1.xpose.msra.mxu0 0.0
  %164 = vmatprep.subr.mxu0 0.0
  %165 = vmatpush1.xpose.msra.mxu0 0.0
  %166 = vmatprep.subr.mxu0 0.0
  %167 = vmatpush1.xpose.msra.mxu0 0.0
  %168 = vmatprep.subr.mxu0 0.0
  %169 = vmatpush1.xpose.msra.mxu0 0.0
  %170 = vmatprep.subr.mxu0 0.0
  %171 = vmatpush1.xpose.msra.mxu0 0.0
  %172 = vmatprep.subr.mxu0 0.0
  %173 = vmatpush1.xpose.msra.mxu0 0.0
  %174 = vmatprep.mubr.f32.mxu0 0.0
  %175 = vmatmul.mubr.f32.gmra.mrb[0].mxu0 %v91
  %v176 = vpop.f32.mrb[0].mxu0
  %v177 = vadd.f32 0.0, %v176
  %v178 = vpop.f32.mrb[0].mxu0
  %179 = vdwg.mxu0
  %v181 = vlaneseq
  %v182 = vshrl.u32 %v181, 7
  %v183 = vsub.s32 0, %v182
  %v184 = vrot.slane %v109, %v183
  %v186 = vadd.f32 %v184, %v177
  %188 = vset.pattern.permute.xlu0 0
  %189 = vperm.xlu0 %188, %v108
  %v190 = vpop.permute.xlu0 %189
  %v192 = vadd.f32 %v190, %v186
  %v193 = vmin.f32 %v192, 0.0
  %v194 = vmul.f32 %v193, 1.442695
  %v195 = vpow.pop %v194
  %v196 = vadd.f32 %v195, 0.0
  %v197 = vadd.f32 %v196, 0.0
  %198 = vst [vmem:[%s6] sm:$0xff] %v197
  // Predicated region
  $region18: #{_lambda_.5} parent=0 // pred_check
    _
  $region19: #{_lambda_.5} parent=0 // pred_check_branch
    %200 = sbr.rel (0) target = $region21
  $region20: #{_lambda_.5} parent=0 // pred_region
    _
  $region21: #{_lambda_.5} parent=0 // pred_fallthru
    _
  // Predicated region
  $region22: #{_lambda_.5} parent=0 // pred_check
    _
  $region23: #{_lambda_.5} parent=0 // pred_check_branch
    %202 = sbr.rel (0) target = $region25
  $region24: #{_lambda_.5} parent=0 // pred_region
    _
  $region25: #{_lambda_.5} parent=0 // pred_fallthru
    _

// kernel: _lambda_.3
$region0: #{_lambda_.3}
  #allocation0 [shape = 'u32[]', space=smem, size = 0x4, offset = 0x4, fixed_abs, tag = 'smem constant byte address 0x4 - core index']
  #allocation1 [shape = 'u32[144,128]{1,0:T(1,128)}', space=vmem, size = 0x12000, scoped, tag = 'internal scratch']
  #allocation2 [shape = 's32[1]{0}', space=sflag, size = 0x4, scoped, tag = 'scoped memory for _lambda_.3']
  #allocation3 [shape = 's32[1]{0:T(128)S(6)}', space=smem, size = 0x200, scoped, tag = 'prefetched SMEM operand 0']
  #allocation4 [shape = 's32[1]{0:T(128)S(6)}', space=smem, size = 0x200, scoped, tag = 'prefetched SMEM operand 1']
  %s0 = inlined_call_operand.<no memory space> [shape: s32[1], index: 0, kind: input, shape index: {}, may-alias: {0,1}]
  %s1 = inlined_call_operand.<no memory space> [shape: s32[1], index: 1, kind: input, shape index: {}, may-alias: {0,1}]
  %s2 = inlined_call_operand.vmem [shape: f32[128,128], index: 2, kind: input, shape index: {}, may-alias: {2,3}]
  %s3 = inlined_call_operand.vmem [shape: f32[128,128], index: 3, kind: input, shape index: {}, may-alias: {2,3}]
  %s4 = inlined_call_operand.vmem [shape: f32[128,1], index: 4, kind: input, shape index: {}]
  %s5 = inlined_call_operand.vmem [shape: f32[1,128], index: 5, kind: input, shape index: {}]
  %s6 = inlined_call_operand.vmem [shape: f32[8,128], index: 6, kind: output, shape index: {}]
  %s7 = sld [smem:[#allocation0]]
  $region26: #{_lambda_.3} parent=0
    _
  %s9 = ssub.s32 1, %s7
  %s10 = scalar_select 0, %s9, %s7
  %11 = sst [smem:[#allocation3]] %s0
  %12 = sst [smem:[#allocation4]] %s1
  // Predicated region
  $region2: #{_lambda_.3} parent=0 // pred_check
    _
  $region3: #{_lambda_.3} parent=0 // pred_check_branch
    %14 = sbr.rel (0) target = $region5
  $region4: #{_lambda_.3} parent=0 // pred_region
    %s15 = sld [smem:[#allocation3]]
    %s16 = smul.u32 16, %s15
    %p17 = scmp.lt.s32.totalorder %s16, 15
    %s18 = scalar_select %p17, %s16, 15
    %s19 = smul.addr %s18, 8
    %s20 = scalar_lea.vmem %s2, %s19
    %s21 = sld [smem:[#allocation3]]
    %s22 = smul.u32 16, %s21
  $region5: #{_lambda_.3} parent=0 // pred_fallthru
    _
  // Predicated region
  $region6: #{_lambda_.3} parent=0 // pred_check
    _
  $region7: #{_lambda_.3} parent=0 // pred_check_branch
    %24 = sbr.rel (0) target = $region9
  $region8: #{_lambda_.3} parent=0 // pred_region
    %s25 = sld [smem:[#allocation4]]
    %s26 = smul.u32 16, %s25
    %p27 = scmp.lt.s32.totalorder %s26, 15
    %s28 = scalar_select %p27, %s26, 15
    %s29 = smul.addr %s28, 8
    %s30 = scalar_lea.vmem %s3, %s29
    %s31 = sld [smem:[#allocation4]]
    %s32 = smul.u32 16, %s31
  $region9: #{_lambda_.3} parent=0 // pred_fallthru
    _
  // Predicated region
  $region10: #{_lambda_.3} parent=0 // pred_check
    _
  $region11: #{_lambda_.3} parent=0 // pred_check_branch
    %34 = sbr.rel (0) target = $region13
  $region12: #{_lambda_.3} parent=0 // pred_region
    %s35 = sld [smem:[#allocation3]]
    %s36 = smul.u32 16, %s35
    %p37 = scmp.lt.s32.totalorder %s36, 15
    %s38 = scalar_select %p37, %s36, 15
    %s39 = smul.addr %s38, 8
    %s40 = scalar_lea.vmem %s4, %s39
    %s41 = sld [smem:[#allocation3]]
    %s42 = smul.u32 16, %s41
  $region13: #{_lambda_.3} parent=0 // pred_fallthru
    _
  // Predicated region
  $region14: #{_lambda_.3} parent=0 // pred_check
    _
  $region15: #{_lambda_.3} parent=0 // pred_check_branch
    %44 = sbr.rel (0) target = $region17
  $region16: #{_lambda_.3} parent=0 // pred_region
    %s45 = sld [smem:[#allocation4]]
    %p46 = scmp.lt.s32.totalorder %s45, 0
    %s47 = scalar_select %p46, %s45, 0
    %s48 = scalar_lea.vmem %s5, %s47
    %s49 = sld [smem:[#allocation4]]
  $region17: #{_lambda_.3} parent=0 // pred_fallthru
    _
  %s50 = sld [smem:[#allocation3]]
  %s51 = smul.u32 16, %s50
  %p52 = scmp.lt.s32.totalorder %s51, 15
  %s53 = scalar_select %p52, %s51, 15
  %s54 = smul.addr %s53, 8
  %s55 = scalar_lea.vmem %s2, %s54
  %s56 = sld [smem:[#allocation4]]
  %s57 = smul.u32 16, %s56
  %p58 = scmp.lt.s32.totalorder %s57, 15
  %s59 = scalar_select %p58, %s57, 15
  %s60 = smul.addr %s59, 8
  %s61 = scalar_lea.vmem %s3, %s60
  %s62 = sld [smem:[#allocation3]]
  %s63 = smul.u32 16, %s62
  %p64 = scmp.lt.s32.totalorder %s63, 15
  %s65 = scalar_select %p64, %s63, 15
  %s66 = smul.addr %s65, 8
  %s67 = scalar_lea.vmem %s4, %s66
  %s68 = sld [smem:[#allocation4]]
  %p69 = scmp.lt.s32.totalorder %s68, 0
  %s70 = scalar_select %p69, %s68, 0
  %s71 = scalar_lea.vmem %s5, %s70
  %s72 = sld [smem:[#allocation3]]
  %s73 = smul.u32 16, %s72
  %p74 = scmp.lt.s32.totalorder %s73, 15
  %s75 = scalar_select %p74, %s73, 15
  %s76 = smul.addr %s75, 8
  %s77 = scalar_lea.vmem %s2, %s76
  %s78 = sld [smem:[#allocation3]]
  %s79 = smul.u32 16, %s78
  %s80 = sld [smem:[#allocation4]]
  %s81 = smul.u32 16, %s80
  %p82 = scmp.lt.s32.totalorder %s81, 15
  %s83 = scalar_select %p82, %s81, 15
  %s84 = smul.addr %s83, 8
  %s85 = scalar_lea.vmem %s3, %s84
  %s86 = sld [smem:[#allocation4]]
  %s87 = smul.u32 16, %s86
  %s88 = sld [smem:[#allocation3]]
  %s89 = smul.u32 16, %s88
  %p90 = scmp.lt.s32.totalorder %s89, 15
  %s91 = scalar_select %p90, %s89, 15
  %s92 = smul.addr %s91, 8
  %s93 = scalar_lea.vmem %s4, %s92
  %s94 = sld [smem:[#allocation3]]
  %s95 = smul.u32 16, %s94
  %s96 = sld [smem:[#allocation4]]
  %p97 = scmp.lt.s32.totalorder %s96, 0
  %s98 = scalar_select %p97, %s96, 0
  %s99 = scalar_lea.vmem %s5, %s98
  %s100 = sld [smem:[#allocation4]]
  %v101 = vld [vmem:[%s77] sm:$0xff]
  %v102 = vld [vmem:[%s77 + $0x8] sm:$0xff]
  %v103 = vld [vmem:[%s77 + $0x10] sm:$0xff]
  %v104 = vld [vmem:[%s77 + $0x18] sm:$0xff]
  %v105 = vld [vmem:[%s77 + $0x20] sm:$0xff]
  %v106 = vld [vmem:[%s77 + $0x28] sm:$0xff]
  %v107 = vld [vmem:[%s77 + $0x30] sm:$0xff]
  %v108 = vld [vmem:[%s77 + $0x38] sm:$0xff]
  %v109 = vld [vmem:[%s77 + $0x40] sm:$0xff]
  %v110 = vld [vmem:[%s77 + $0x48] sm:$0xff]
  %v111 = vld [vmem:[%s77 + $0x50] sm:$0xff]
  %v112 = vld [vmem:[%s77 + $0x58] sm:$0xff]
  %v113 = vld [vmem:[%s77 + $0x60] sm:$0xff]
  %v114 = vld [vmem:[%s77 + $0x68] sm:$0xff]
  %v115 = vld [vmem:[%s77 + $0x70] sm:$0xff]
  %v116 = vld [vmem:[%s77 + $0x78] sm:$0xff]
  %v117 = vld [vmem:[%s85] sm:$0xff]
  %v118 = vld [vmem:[%s85 + $0x8] sm:$0xff]
  %v119 = vld [vmem:[%s85 + $0x10] sm:$0xff]
  %v120 = vld [vmem:[%s85 + $0x18] sm:$0xff]
  %v121 = vld [vmem:[%s85 + $0x20] sm:$0xff]
  %v122 = vld [vmem:[%s85 + $0x28] sm:$0xff]
  %v123 = vld [vmem:[%s85 + $0x30] sm:$0xff]
  %v124 = vld [vmem:[%s85 + $0x38] sm:$0xff]
  %v125 = vld [vmem:[%s85 + $0x40] sm:$0xff]
  %v126 = vld [vmem:[%s85 + $0x48] sm:$0xff]
  %v127 = vld [vmem:[%s85 + $0x50] sm:$0xff]
  %v128 = vld [vmem:[%s85 + $0x58] sm:$0xff]
  %v129 = vld [vmem:[%s85 + $0x60] sm:$0xff]
  %v130 = vld [vmem:[%s85 + $0x68] sm:$0xff]
  %v131 = vld [vmem:[%s85 + $0x70] sm:$0xff]
  %v132 = vld [vmem:[%s85 + $0x78] sm:$0xff]
  %v133 = vld [vmem:[%s93] sm:$0xff]
  %v134 = vld [vmem:[%s93 + $0x8] sm:$0xff]
  %v135 = vld [vmem:[%s93 + $0x10] sm:$0xff]
  %v136 = vld [vmem:[%s93 + $0x18] sm:$0xff]
  %v137 = vld [vmem:[%s93 + $0x20] sm:$0xff]
  %v138 = vld [vmem:[%s93 + $0x28] sm:$0xff]
  %v139 = vld [vmem:[%s93 + $0x30] sm:$0xff]
  %v140 = vld [vmem:[%s93 + $0x38] sm:$0xff]
  %v141 = vld [vmem:[%s93 + $0x40] sm:$0xff]
  %v142 = vld [vmem:[%s93 + $0x48] sm:$0xff]
  %v143 = vld [vmem:[%s93 + $0x50] sm:$0xff]
  %v144 = vld [vmem:[%s93 + $0x58] sm:$0xff]
  %v145 = vld [vmem:[%s93 + $0x60] sm:$0xff]
  %v146 = vld [vmem:[%s93 + $0x68] sm:$0xff]
  %v147 = vld [vmem:[%s93 + $0x70] sm:$0xff]
  %v148 = vld [vmem:[%s93 + $0x78] sm:$0xff]
  %v149 = vld [vmem:[%s99] sm:$0x1]
  %150 = vmatprep.subr.mxu0 0.0
  %151 = vmatpush1.xpose.msra.mxu0 %v117
  %152 = vmatprep.subr.mxu0 0.0
  %153 = vmatpush1.xpose.msra.mxu0 %v118
  %154 = vmatprep.subr.mxu0 0.0
  %155 = vmatpush1.xpose.msra.mxu0 %v119
  %156 = vmatprep.subr.mxu0 0.0
  %157 = vmatpush1.xpose.msra.mxu0 %v120
  %158 = vmatprep.subr.mxu0 0.0
  %159 = vmatpush1.xpose.msra.mxu0 %v121
  %160 = vmatprep.subr.mxu0 0.0
  %161 = vmatpush1.xpose.msra.mxu0 %v122
  %162 = vmatprep.subr.mxu0 0.0
  %163 = vmatpush1.xpose.msra.mxu0 %v123
  %164 = vmatprep.subr.mxu0 0.0
  %165 = vmatpush1.xpose.msra.mxu0 %v124
  %166 = vmatprep.subr.mxu0 0.0
  %167 = vmatpush1.xpose.msra.mxu0 %v125
  %168 = vmatprep.subr.mxu0 0.0
  %169 = vmatpush1.xpose.msra.mxu0 %v126
  %170 = vmatprep.subr.mxu0 0.0
  %171 = vmatpush1.xpose.msra.mxu0 %v127
  %172 = vmatprep.subr.mxu0 0.0
  %173 = vmatpush1.xpose.msra.mxu0 %v128
  %174 = vmatprep.subr.mxu0 0.0
  %175 = vmatpush1.xpose.msra.mxu0 %v129
  %176 = vmatprep.subr.mxu0 0.0
  %177 = vmatpush1.xpose.msra.mxu0 %v130
  %178 = vmatprep.subr.mxu0 0.0
  %179 = vmatpush1.xpose.msra.mxu0 %v131
  %180 = vmatprep.subr.mxu0 0.0
  %181 = vmatpush1.xpose.msra.mxu0 %v132
  %182 = vmatprep.subr.mxu0 0.0
  %183 = vmatpush1.xpose.msra.mxu0 0.0
  %184 = vmatprep.subr.mxu0 0.0
  %185 = vmatpush1.xpose.msra.mxu0 0.0
  %186 = vmatprep.subr.mxu0 0.0
  %187 = vmatpush1.xpose.msra.mxu0 0.0
  %188 = vmatprep.subr.mxu0 0.0
  %189 = vmatpush1.xpose.msra.mxu0 0.0
  %190 = vmatprep.subr.mxu0 0.0
  %191 = vmatpush1.xpose.msra.mxu0 0.0
  %192 = vmatprep.subr.mxu0 0.0
  %193 = vmatpush1.xpose.msra.mxu0 0.0
  %194 = vmatprep.subr.mxu0 0.0
  %195 = vmatpush1.xpose.msra.mxu0 0.0
  %196 = vmatprep.subr.mxu0 0.0
  %197 = vmatpush1.xpose.msra.mxu0 0.0
  %198 = vmatprep.subr.mxu0 0.0
  %199 = vmatpush1.xpose.msra.mxu0 0.0
  %200 = vmatprep.subr.mxu0 0.0
  %201 = vmatpush1.xpose.msra.mxu0 0.0
  %202 = vmatprep.subr.mxu0 0.0
  %203 = vmatpush1.xpose.msra.mxu0 0.0
  %204 = vmatprep.subr.mxu0 0.0
  %205 = vmatpush1.xpose.msra.mxu0 0.0
  %206 = vmatprep.subr.mxu0 0.0
  %207 = vmatpush1.xpose.msra.mxu0 0.0
  %208 = vmatprep.subr.mxu0 0.0
  %209 = vmatpush1.xpose.msra.mxu0 0.0
  %210 = vmatprep.subr.mxu0 0.0
  %211 = vmatpush1.xpose.msra.mxu0 0.0
  %212 = vmatprep.subr.mxu0 0.0
  %213 = vmatpush1.xpose.msra.mxu0 0.0
  %214 = vmatprep.mubr.f32.mxu0 0.0
  %215 = vmatmul.mubr.f32.gmra.mrb[0].mxu0 %v101
  %v216 = vpop.f32.mrb[0].mxu0
  %v217 = vadd.f32 0.0, %v216
  %v218 = vpop.f32.mrb[0].mxu0
  %219 = vmatprep.mubr.f32.mxu0 0.0
  %220 = vmatmul.mubr.f32.gmra.mrb[0].mxu0 %v102
  %v221 = vpop.f32.mrb[0].mxu0
  %v222 = vadd.f32 0.0, %v221
  %v223 = vpop.f32.mrb[0].mxu0
  %224 = vmatprep.mubr.f32.mxu0 0.0
  %225 = vmatmul.mubr.f32.gmra.mrb[0].mxu0 %v103
  %v226 = vpop.f32.mrb[0].mxu0
  %v227 = vadd.f32 0.0, %v226
  %v228 = vpop.f32.mrb[0].mxu0
  %229 = vmatprep.mubr.f32.mxu0 0.0
  %230 = vmatmul.mubr.f32.gmra.mrb[0].mxu0 %v104
  %v231 = vpop.f32.mrb[0].mxu0
  %v232 = vadd.f32 0.0, %v231
  %v233 = vpop.f32.mrb[0].mxu0
  %234 = vmatprep.mubr.f32.mxu0 0.0
  %235 = vmatmul.mubr.f32.gmra.mrb[0].mxu0 %v105
  %v236 = vpop.f32.mrb[0].mxu0
  %v237 = vadd.f32 0.0, %v236
  %v238 = vpop.f32.mrb[0].mxu0
  %239 = vmatprep.mubr.f32.mxu0 0.0
  %240 = vmatmul.mubr.f32.gmra.mrb[0].mxu0 %v106
  %v241 = vpop.f32.mrb[0].mxu0
  %v242 = vadd.f32 0.0, %v241
  %v243 = vpop.f32.mrb[0].mxu0
  %244 = vmatprep.mubr.f32.mxu0 0.0
  %245 = vmatmul.mubr.f32.gmra.mrb[0].mxu0 %v107
  %v246 = vpop.f32.mrb[0].mxu0
  %v247 = vadd.f32 0.0, %v246
  %v248 = vpop.f32.mrb[0].mxu0
  %249 = vmatprep.mubr.f32.mxu0 0.0
  %250 = vmatmul.mubr.f32.gmra.mrb[0].mxu0 %v108
  %v251 = vpop.f32.mrb[0].mxu0
  %v252 = vadd.f32 0.0, %v251
  %v253 = vpop.f32.mrb[0].mxu0
  %254 = vmatprep.mubr.f32.mxu0 0.0
  %255 = vmatmul.mubr.f32.gmra.mrb[0].mxu0 %v109
  %v256 = vpop.f32.mrb[0].mxu0
  %v257 = vadd.f32 0.0, %v256
  %v258 = vpop.f32.mrb[0].mxu0
  %259 = vmatprep.mubr.f32.mxu0 0.0
  %260 = vmatmul.mubr.f32.gmra.mrb[0].mxu0 %v110
  %v261 = vpop.f32.mrb[0].mxu0
  %v262 = vadd.f32 0.0, %v261
  %v263 = vpop.f32.mrb[0].mxu0
  %264 = vmatprep.mubr.f32.mxu0 0.0
  %265 = vmatmul.mubr.f32.gmra.mrb[0].mxu0 %v111
  %v266 = vpop.f32.mrb[0].mxu0
  %v267 = vadd.f32 0.0, %v266
  %v268 = vpop.f32.mrb[0].mxu0
  %269 = vmatprep.mubr.f32.mxu0 0.0
  %270 = vmatmul.mubr.f32.gmra.mrb[0].mxu0 %v112
  %v271 = vpop.f32.mrb[0].mxu0
  %v272 = vadd.f32 0.0, %v271
  %v273 = vpop.f32.mrb[0].mxu0
  %274 = vmatprep.mubr.f32.mxu0 0.0
  %275 = vmatmul.mubr.f32.gmra.mrb[0].mxu0 %v113
  %v276 = vpop.f32.mrb[0].mxu0
  %v277 = vadd.f32 0.0, %v276
  %v278 = vpop.f32.mrb[0].mxu0
  %279 = vmatprep.mubr.f32.mxu0 0.0
  %280 = vmatmul.mubr.f32.gmra.mrb[0].mxu0 %v114
  %v281 = vpop.f32.mrb[0].mxu0
  %v282 = vadd.f32 0.0, %v281
  %v283 = vpop.f32.mrb[0].mxu0
  %284 = vmatprep.mubr.f32.mxu0 0.0
  %285 = vmatmul.mubr.f32.gmra.mrb[0].mxu0 %v115
  %v286 = vpop.f32.mrb[0].mxu0
  %v287 = vadd.f32 0.0, %v286
  %v288 = vpop.f32.mrb[0].mxu0
  %289 = vmatprep.mubr.f32.mxu0 0.0
  %290 = vmatmul.mubr.f32.gmra.mrb[0].mxu0 %v116
  %v291 = vpop.f32.mrb[0].mxu0
  %v292 = vadd.f32 0.0, %v291
  %v293 = vpop.f32.mrb[0].mxu0
  %294 = vdwg.mxu0
  %v296 = vlaneseq
  %v297 = vshrl.u32 %v296, 7
  %v298 = vsub.s32 0, %v297
  %v299 = vrot.slane %v149, %v298
  %v301 = vadd.f32 %v299, %v217
  %303 = vset.pattern.permute.xlu0 0
  %304 = vperm.xlu0 %303, %v133
  %v305 = vpop.permute.xlu0 %304
  %v307 = vadd.f32 %v305, %v301
  %v308 = vmin.f32 %v307, 0.0
  %v309 = vmul.f32 %v308, 1.442695
  %v310 = vpow.pop %v309
  %v311 = vadd.f32 %v310, 0.0
  %v312 = vadd.f32 %v299, %v222
  %314 = vset.pattern.permute.xlu0 0
  %315 = vperm.xlu0 %314, %v134
  %v316 = vpop.permute.xlu0 %315
  %v318 = vadd.f32 %v316, %v312
  %v319 = vmin.f32 %v318, 0.0
  %v320 = vmul.f32 %v319, 1.442695
  %v321 = vpow.pop %v320
  %v322 = vadd.f32 %v321, 0.0
  %v323 = vadd.f32 %v299, %v227
  %325 = vset.pattern.permute.xlu0 0
  %326 = vperm.xlu0 %325, %v135
  %v327 = vpop.permute.xlu0 %326
  %v329 = vadd.f32 %v327, %v323
  %v330 = vmin.f32 %v329, 0.0
  %v331 = vmul.f32 %v330, 1.442695
  %v332 = vpow.pop %v331
  %v333 = vadd.f32 %v311, %v332
  %v334 = vadd.f32 %v299, %v232
  %336 = vset.pattern.permute.xlu0 0
  %337 = vperm.xlu0 %336, %v136
  %v338 = vpop.permute.xlu0 %337
  %v340 = vadd.f32 %v338, %v334
  %v341 = vmin.f32 %v340, 0.0
  %v342 = vmul.f32 %v341, 1.442695
  %v343 = vpow.pop %v342
  %v344 = vadd.f32 %v322, %v343
  %v345 = vadd.f32 %v299, %v237
  %347 = vset.pattern.permute.xlu0 0
  %348 = vperm.xlu0 %347, %v137
  %v349 = vpop.permute.xlu0 %348
  %v351 = vadd.f32 %v349, %v345
  %v352 = vmin.f32 %v351, 0.0
  %v353 = vmul.f32 %v352, 1.442695
  %v354 = vpow.pop %v353
  %v355 = vadd.f32 %v333, %v354
  %v356 = vadd.f32 %v299, %v242
  %358 = vset.pattern.permute.xlu0 0
  %359 = vperm.xlu0 %358, %v138
  %v360 = vpop.permute.xlu0 %359
  %v362 = vadd.f32 %v360, %v356
  %v363 = vmin.f32 %v362, 0.0
  %v364 = vmul.f32 %v363, 1.442695
  %v365 = vpow.pop %v364
  %v366 = vadd.f32 %v344, %v365
  %v367 = vadd.f32 %v299, %v247
  %369 = vset.pattern.permute.xlu0 0
  %370 = vperm.xlu0 %369, %v139
  %v371 = vpop.permute.xlu0 %370
  %v373 = vadd.f32 %v371, %v367
  %v374 = vmin.f32 %v373, 0.0
  %v375 = vmul.f32 %v374, 1.442695
  %v376 = vpow.pop %v375
  %v377 = vadd.f32 %v355, %v376
  %v378 = vadd.f32 %v299, %v252
  %380 = vset.pattern.permute.xlu0 0
  %381 = vperm.xlu0 %380, %v140
  %v382 = vpop.permute.xlu0 %381
  %v384 = vadd.f32 %v382, %v378
  %v385 = vmin.f32 %v384, 0.0
  %v386 = vmul.f32 %v385, 1.442695
  %v387 = vpow.pop %v386
  %v388 = vadd.f32 %v366, %v387
  %v389 = vadd.f32 %v299, %v257
  %391 = vset.pattern.permute.xlu0 0
  %392 = vperm.xlu0 %391, %v141
  %v393 = vpop.permute.xlu0 %392
  %v395 = vadd.f32 %v393, %v389
  %v396 = vmin.f32 %v395, 0.0
  %v397 = vmul.f32 %v396, 1.442695
  %v398 = vpow.pop %v397
  %v399 = vadd.f32 %v377, %v398
  %v400 = vadd.f32 %v299, %v262
  %402 = vset.pattern.permute.xlu0 0
  %403 = vperm.xlu0 %402, %v142
  %v404 = vpop.permute.xlu0 %403
  %v406 = vadd.f32 %v404, %v400
  %v407 = vmin.f32 %v406, 0.0
  %v408 = vmul.f32 %v407, 1.442695
  %v409 = vpow.pop %v408
  %v410 = vadd.f32 %v388, %v409
  %v411 = vadd.f32 %v299, %v267
  %413 = vset.pattern.permute.xlu0 0
  %414 = vperm.xlu0 %413, %v143
  %v415 = vpop.permute.xlu0 %414
  %v417 = vadd.f32 %v415, %v411
  %v418 = vmin.f32 %v417, 0.0
  %v419 = vmul.f32 %v418, 1.442695
  %v420 = vpow.pop %v419
  %v421 = vadd.f32 %v399, %v420
  %v422 = vadd.f32 %v299, %v272
  %424 = vset.pattern.permute.xlu0 0
  %425 = vperm.xlu0 %424, %v144
  %v426 = vpop.permute.xlu0 %425
  %v428 = vadd.f32 %v426, %v422
  %v429 = vmin.f32 %v428, 0.0
  %v430 = vmul.f32 %v429, 1.442695
  %v431 = vpow.pop %v430
  %v432 = vadd.f32 %v410, %v431
  %v433 = vadd.f32 %v299, %v277
  %435 = vset.pattern.permute.xlu0 0
  %436 = vperm.xlu0 %435, %v145
  %v437 = vpop.permute.xlu0 %436
  %v439 = vadd.f32 %v437, %v433
  %v440 = vmin.f32 %v439, 0.0
  %v441 = vmul.f32 %v440, 1.442695
  %v442 = vpow.pop %v441
  %v443 = vadd.f32 %v421, %v442
  %v444 = vadd.f32 %v299, %v282
  %446 = vset.pattern.permute.xlu0 0
  %447 = vperm.xlu0 %446, %v146
  %v448 = vpop.permute.xlu0 %447
  %v450 = vadd.f32 %v448, %v444
  %v451 = vmin.f32 %v450, 0.0
  %v452 = vmul.f32 %v451, 1.442695
  %v453 = vpow.pop %v452
  %v454 = vadd.f32 %v432, %v453
  %v455 = vadd.f32 %v299, %v287
  %457 = vset.pattern.permute.xlu0 0
  %458 = vperm.xlu0 %457, %v147
  %v459 = vpop.permute.xlu0 %458
  %v461 = vadd.f32 %v459, %v455
  %v462 = vmin.f32 %v461, 0.0
  %v463 = vmul.f32 %v462, 1.442695
  %v464 = vpow.pop %v463
  %v465 = vadd.f32 %v443, %v464
  %v466 = vadd.f32 %v299, %v292
  %468 = vset.pattern.permute.xlu0 0
  %469 = vperm.xlu0 %468, %v148
  %v470 = vpop.permute.xlu0 %469
  %v472 = vadd.f32 %v470, %v466
  %v473 = vmin.f32 %v472, 0.0
  %v474 = vmul.f32 %v473, 1.442695
  %v475 = vpow.pop %v474
  %v476 = vadd.f32 %v454, %v475
  %v477 = vadd.f32 %v465, %v476
  %478 = vst [vmem:[%s6] sm:$0xff] %v477
  // Predicated region
  $region18: #{_lambda_.3} parent=0 // pred_check
    _
  $region19: #{_lambda_.3} parent=0 // pred_check_branch
    %480 = sbr.rel (0) target = $region21
  $region20: #{_lambda_.3} parent=0 // pred_region
    _
  $region21: #{_lambda_.3} parent=0 // pred_fallthru
    _
  // Predicated region
  $region22: #{_lambda_.3} parent=0 // pred_check
    _
  $region23: #{_lambda_.3} parent=0 // pred_check_branch
    %482 = sbr.rel (0) target = $region25
  $region24: #{_lambda_.3} parent=0 // pred_region
    _
  $region25: #{_lambda_.3} parent=0 // pred_fallthru
    _

</llo_original>
